<compile_context>
chip_gen: v5e
topology: v5e:2x2
jax: 0.10.0
libtpu: 0.0.40
codegen_flags: <defaults>
</compile_context>

<pallas_src>
import functools
import math

import jax
import jax.numpy as jnp
from jax import lax
from jax.experimental import pallas as pl
from jax.experimental.pallas import tpu as pltpu


_VMEM_LIMIT = 32 * 1024 * 1024  # conservative; fits v5e/v6e (128 MiB) and v7x (64 MiB)


def _tile(dim, cap, unit):
    """Largest tile <= cap that divides `dim` and is a multiple of `unit`.
    Falls back to the full dim (always a legal BlockSpec block)."""
    if dim <= cap:
        return dim
    t = (cap // unit) * unit
    while t >= unit:
        if dim % t == 0:
            return t
        t -= unit
    return dim


# ---------------------------------------------------------------------------
# Tiled, pipelined linear:  y = x @ w + b
# ---------------------------------------------------------------------------
def _linear_kernel(x_ref, w_ref, b_ref, o_ref, acc_ref):
    k = pl.program_id(2)

    @pl.when(k == 0)
    def _():
        acc_ref[...] = jnp.zeros_like(acc_ref)

    acc_ref[...] += jnp.dot(x_ref[...], w_ref[...],
                            preferred_element_type=jnp.float32)

    @pl.when(k == pl.num_programs(2) - 1)
    def _():
        # bias added once, at finalize (not once per k step)
        o_ref[...] = (acc_ref[...] + b_ref[...]).astype(o_ref.dtype)


def pallas_linear(x2d, w, b, *, tm_cap=256, tn_cap=256, tk_cap=512):
    """x2d: (N, E_in), w: (E_in, E_out) [torch weight transposed], b: (E_out,)."""
    N, E_in = x2d.shape
    E_out = w.shape[1]
    tm = _tile(N, tm_cap, 8)        # sublane-aligned row tile
    tn = _tile(E_out, tn_cap, 128)  # lane-aligned output tile
    tk = _tile(E_in, tk_cap, 128)   # lane-aligned contraction tile
    assert N % tm == 0 and E_out % tn == 0 and E_in % tk == 0
    b2d = b.reshape(1, E_out)

    return pl.pallas_call(
        _linear_kernel,
        out_shape=jax.ShapeDtypeStruct((N, E_out), x2d.dtype),
        grid=(N // tm, E_out // tn, E_in // tk),
        in_specs=[
            pl.BlockSpec((tm, tk), lambda i, j, k: (i, k)),
            pl.BlockSpec((tk, tn), lambda i, j, k: (k, j)),
            pl.BlockSpec((1, tn), lambda i, j, k: (0, j)),
        ],
        out_specs=pl.BlockSpec((tm, tn), lambda i, j, k: (i, j)),
        scratch_shapes=[pltpu.VMEM((tm, tn), jnp.float32)],
        compiler_params=pltpu.CompilerParams(
            dimension_semantics=("parallel", "parallel", "arbitrary"),
            vmem_limit_bytes=_VMEM_LIMIT,
        ),
    )(x2d, w, b2d)


# ---------------------------------------------------------------------------
# Multi-head scaled-dot-product attention, flash / online-softmax formulation.
# Inputs/outputs stay in (B, S, E) layout; heads are split/merged inside VMEM.
# ---------------------------------------------------------------------------
def _mha_attention_kernel(q_ref, k_ref, v_ref, o_ref, m_sc, l_sc, acc_sc,
                          *, num_heads, head_dim, scale):
    ki = pl.program_id(2)

    @pl.when(ki == 0)
    def _():
        m_sc[...] = jnp.full_like(m_sc, -jnp.inf)
        l_sc[...] = jnp.zeros_like(l_sc)
        acc_sc[...] = jnp.zeros_like(acc_sc)

    q = q_ref[0] * jnp.asarray(scale, q_ref.dtype)   # (tq,  E) pre-scaled once
    k = k_ref[0]                                     # (tkv, E)
    v = v_ref[0]                                     # (tkv, E)

    for h in range(num_heads):  # static unroll over heads
        sl = slice(h * head_dim, (h + 1) * head_dim)
        qh = q[:, sl]
        kh = k[:, sl]
        vh = v[:, sl]

        # contract the last dims directly -> no materialized k.T (no XLU transpose)
        s = lax.dot_general(qh, kh, (((1,), (1,)), ((), ())),
                            preferred_element_type=jnp.float32)      # (tq, tkv)

        m_prev = m_sc[h]                                             # (tq, 1)
        m_new = jnp.maximum(m_prev, jnp.max(s, axis=-1, keepdims=True))
        alpha = jnp.exp(m_prev - m_new)
        p = jnp.exp(s - m_new)                                       # (tq, tkv)
        l_sc[h] = alpha * l_sc[h] + jnp.sum(p, axis=-1, keepdims=True)
        acc_sc[h] = alpha * acc_sc[h] + jnp.dot(
            p, vh.astype(jnp.float32), preferred_element_type=jnp.float32)
        m_sc[h] = m_new

    @pl.when(ki == pl.num_programs(2) - 1)
    def _():
        outs = [acc_sc[h] * pl.reciprocal(l_sc[h], approx=True)
                for h in range(num_heads)]
        # one lane-dense store of the full (tq, E) tile
        o_ref[0] = jnp.concatenate(outs, axis=-1).astype(o_ref.dtype)


def pallas_mha_attention(q, k, v, *, num_heads, tq_cap=128, tkv_cap=128):
    """q, k, v: (B, S, E) projected activations -> (B, S, E) attention output."""
    B, S, E = q.shape
    assert E % num_heads == 0
    head_dim = E // num_heads
    scale = 1.0 / math.sqrt(head_dim)
    tq = _tile(S, tq_cap, 8)
    tkv = _tile(S, tkv_cap, 8)
    assert S % tq == 0 and S % tkv == 0

    kern = functools.partial(_mha_attention_kernel, num_heads=num_heads,
                             head_dim=head_dim, scale=scale)
    q_spec = pl.BlockSpec((1, tq, E), lambda b, qi, ki: (b, qi, 0))
    kv_spec = pl.BlockSpec((1, tkv, E), lambda b, qi, ki: (b, ki, 0))

    return pl.pallas_call(
        kern,
        out_shape=jax.ShapeDtypeStruct((B, S, E), q.dtype),
        grid=(B, S // tq, S // tkv),
        in_specs=[q_spec, kv_spec, kv_spec],
        # same output block across the kv axis -> accumulator-resident in VMEM
        out_specs=pl.BlockSpec((1, tq, E), lambda b, qi, ki: (b, qi, 0)),
        scratch_shapes=[
            pltpu.VMEM((num_heads, tq, 1), jnp.float32),         # running max m
            pltpu.VMEM((num_heads, tq, 1), jnp.float32),         # running denom l
            pltpu.VMEM((num_heads, tq, head_dim), jnp.float32),  # PV accumulator
        ],
        compiler_params=pltpu.CompilerParams(
            dimension_semantics=("parallel", "parallel", "arbitrary"),
            vmem_limit_bytes=_VMEM_LIMIT,
        ),
    )(q, k, v)


# ---------------------------------------------------------------------------
# Full module forward (mask=None path of MultiHeadedAttention)
# ---------------------------------------------------------------------------
def multi_headed_attention(queries, keys, values, params, *, num_heads):
    B, S, E = queries.shape
    assert E % num_heads == 0

    def proj(x, w, b):
        return pallas_linear(x.reshape(B * S, E), w, b).reshape(B, S, E)

    q = proj(queries, params["wq"], params["bq"])
    k = proj(keys, params["wk"], params["bk"])
    v = proj(values, params["wv"], params["bv"])

    # head split / merge happens inside the attention kernel (no HBM transposes)
    sdp = pallas_mha_attention(q, k, v, num_heads=num_heads)     # (B, S, E)

    out = pallas_linear(sdp.reshape(B * S, E), params["wo"], params["bo"])
    return out.reshape(B, S, E)


# TODO(synk): the optional mask path of ScaledDotProduct is not implemented
# (the module under test is constructed with mask=None).


# ---------------------------------------------------------------------------
# Pure-JAX reference (numerical check) + deterministic parameter init
# ---------------------------------------------------------------------------
def reference_mha(queries, keys, values, params, *, num_heads):
    B, S, E = queries.shape
    D = E // num_heads

    def lin(x, w, b):
        return x @ w + b

    q = lin(queries, params["wq"], params["bq"]).reshape(B, S, num_heads, D).transpose(0, 2, 1, 3)
    k = lin(keys, params["wk"], params["bk"]).reshape(B, S, num_heads, D).transpose(0, 2, 1, 3)
    v = lin(values, params["wv"], params["bv"]).reshape(B, S, num_heads, D).transpose(0, 2, 1, 3)
    s = jnp.einsum("bhqd,bhkd->bhqk", q, k) / math.sqrt(D)
    p = jax.nn.softmax(s, axis=-1)
    o = jnp.einsum("bhqk,bhkd->bhqd", p, v).transpose(0, 2, 1, 3).reshape(B, S, E)
    return lin(o, params["wo"], params["bo"])


def init_params(key, embed_len):
    bound = 1.0 / math.sqrt(embed_len)
    names = ["q", "k", "v", "o"]
    params = {}
    keys = jax.random.split(key, 2 * len(names))
    for i, n in enumerate(names):
        # weight stored as (E_in, E_out) = torch_weight.T
        params[f"w{n}"] = jax.random.uniform(
            keys[2 * i], (embed_len, embed_len), jnp.float32, -bound, bound
        )
        params[f"b{n}"] = jax.random.uniform(
            keys[2 * i + 1], (embed_len,), jnp.float32, -bound, bound
        )
    return params


# ---------------------------------------------------------------------------
if __name__ == "__main__":
    batch_size = 2
    seq_len = 8
    embed_len = 32
    num_heads = 4  # head_length = 8

    root = jax.random.PRNGKey(0)
    k_params, k_q, k_k, k_v = jax.random.split(root, 4)

    params = init_params(k_params, embed_len)
    queries = jax.random.normal(k_q, (batch_size, seq_len, embed_len), jnp.float32)
    keys = jax.random.normal(k_k, (batch_size, seq_len, embed_len), jnp.float32)
    values = jax.random.normal(k_v, (batch_size, seq_len, embed_len), jnp.float32)

    out = multi_headed_attention(queries, keys, values, params, num_heads=num_heads)
    out = jax.block_until_ready(out)

    assert out.shape == (batch_size, seq_len, embed_len), out.shape
    assert bool(jnp.all(jnp.isfinite(out)))

    ref = reference_mha(queries, keys, values, params, num_heads=num_heads)
    assert jnp.allclose(out, ref, atol=1e-2, rtol=1e-2), float(jnp.max(jnp.abs(out - ref)))

    print("KERNEL_OK")
</pallas_src>

<mosaic_0001>
module attributes {stable_mosaic.version = 11 : i64} {
  func.func @_linear_kernel(%arg0: i32, %arg1: i32, %arg2: i32, %arg3: memref<16x32xf32, #tpu.memory_space<vmem>>, %arg4: memref<32x32xf32, #tpu.memory_space<vmem>>, %arg5: memref<1x32xf32, #tpu.memory_space<vmem>>, %arg6: memref<16x32xf32, #tpu.memory_space<vmem>>, %arg7: memref<16x32xf32, #tpu.memory_space<vmem>>) attributes {dimension_semantics = [#tpu.dimension_semantics<parallel>, #tpu.dimension_semantics<parallel>, #tpu.dimension_semantics<arbitrary>], iteration_bounds = array<i64: 1, 1, 1>, scalar_prefetch = 0 : i64, scratch_operands = 1 : i64, tpu.core_type = #tpu.core_type<tc>, window_params = [{transform_indices = @transform_0, window_bounds = array<i64: 16, 32>}, {transform_indices = @transform_1, window_bounds = array<i64: 32, 32>}, {transform_indices = @transform_2, window_bounds = array<i64: 1, 32>}, {transform_indices = @transform_3, window_bounds = array<i64: 16, 32>}]} {
    %c0_i32 = arith.constant 0 : i32
    %0 = arith.cmpi eq, %arg2, %c0_i32 : i32
    %1 = arith.extui %0 : i1 to i32
    %c0_i32_0 = arith.constant 0 : i32
    %2 = arith.cmpi ne, %1, %c0_i32_0 : i32
    scf.if %2 {
      %cst_10 = arith.constant 0.000000e+00 : f32
      %12 = vector.broadcast %cst_10 : f32 to vector<16x32xf32>
      %c0_11 = arith.constant 0 : index
      %c0_12 = arith.constant 0 : index
      %13 = vector.load %arg7[%c0_11, %c0_12] : memref<16x32xf32, #tpu.memory_space<vmem>>, vector<16x32xf32>
      tpu.vector_store %arg7[%c0_11, %c0_12], %12 {strides = array<i32>} : memref<16x32xf32, #tpu.memory_space<vmem>>, vector<16x32xf32>,
    } else {
    }
    %c0 = arith.constant 0 : index
    %c0_1 = arith.constant 0 : index
    %3 = vector.load %arg7[%c0, %c0_1] : memref<16x32xf32, #tpu.memory_space<vmem>>, vector<16x32xf32>
    %c0_2 = arith.constant 0 : index
    %c0_3 = arith.constant 0 : index
    %4 = vector.load %arg3[%c0_2, %c0_3] : memref<16x32xf32, #tpu.memory_space<vmem>>, vector<16x32xf32>
    %c0_4 = arith.constant 0 : index
    %c0_5 = arith.constant 0 : index
    %5 = vector.load %arg4[%c0_4, %c0_5] : memref<32x32xf32, #tpu.memory_space<vmem>>, vector<32x32xf32>
    %cst = arith.constant dense<0.000000e+00> : vector<16x32xf32>
    %6 = tpu.matmul %4, %5, %cst {dimension_numbers = #tpu.dot_dimension_numbers<[1], [0], [0], [1], [0, 0, 1, 1], [], []>} : vector<16x32xf32>, vector<32x32xf32>, vector<16x32xf32> -> vector<16x32xf32>
    %7 = arith.addf %3, %6 : vector<16x32xf32>
    %c0_6 = arith.constant 0 : index
    %c0_7 = arith.constant 0 : index
    %8 = vector.load %arg7[%c0_6, %c0_7] : memref<16x32xf32, #tpu.memory_space<vmem>>, vector<16x32xf32>
    tpu.vector_store %arg7[%c0_6, %c0_7], %7 {strides = array<i32>} : memref<16x32xf32, #tpu.memory_space<vmem>>, vector<16x32xf32>,
    %c0_i32_8 = arith.constant 0 : i32
    %9 = arith.cmpi eq, %arg2, %c0_i32_8 : i32
    %10 = arith.extui %9 : i1 to i32
    %c0_i32_9 = arith.constant 0 : i32
    %11 = arith.cmpi ne, %10, %c0_i32_9 : i32
    scf.if %11 {
      %c0_10 = arith.constant 0 : index
      %c0_11 = arith.constant 0 : index
      %12 = vector.load %arg7[%c0_10, %c0_11] : memref<16x32xf32, #tpu.memory_space<vmem>>, vector<16x32xf32>
      %c0_12 = arith.constant 0 : index
      %c0_13 = arith.constant 0 : index
      %13 = vector.load %arg5[%c0_12, %c0_13] : memref<1x32xf32, #tpu.memory_space<vmem>>, vector<1x32xf32>
      %14 = vector.broadcast %13 : vector<1x32xf32> to vector<16x32xf32>
      %15 = arith.addf %12, %14 : vector<16x32xf32>
      %c0_14 = arith.constant 0 : index
      %c0_15 = arith.constant 0 : index
      %16 = vector.load %arg6[%c0_14, %c0_15] : memref<16x32xf32, #tpu.memory_space<vmem>>, vector<16x32xf32>
      tpu.vector_store %arg6[%c0_14, %c0_15], %15 {strides = array<i32>} : memref<16x32xf32, #tpu.memory_space<vmem>>, vector<16x32xf32>,
    } else {
    }
    return
  }
  func.func @transform_0(%arg0: i32, %arg1: i32, %arg2: i32) -> (i32, i32) {
    %c0_i32 = arith.constant 0 : i32
    return %arg0, %arg2 : i32, i32
  }
  func.func @transform_1(%arg0: i32, %arg1: i32, %arg2: i32) -> (i32, i32) {
    %c0_i32 = arith.constant 0 : i32
    return %arg2, %arg1 : i32, i32
  }
  func.func @transform_2(%arg0: i32, %arg1: i32, %arg2: i32) -> (i32, i32) {
    %c0_i32 = arith.constant 0 : i32
    %c0_i32_0 = arith.constant 0 : i32
    return %c0_i32, %arg1 : i32, i32
  }
  func.func @transform_3(%arg0: i32, %arg1: i32, %arg2: i32) -> (i32, i32) {
    %c0_i32 = arith.constant 0 : i32
    return %arg0, %arg1 : i32, i32
  }
}

</mosaic_0001>

<llo_original>
// kernel: tpu_custom_call.1
$region0: #{tpu_custom_call.1}
  #allocation0 [shape = 'u32[]', space=smem, size = 0x4, offset = 0x4, fixed_abs, tag = 'smem constant byte address 0x4 - core index']
  #allocation1 [shape = 'u32[72,128]{1,0:T(1,128)}', space=vmem, size = 0x9000, scoped, tag = 'internal scratch']
  #allocation2 [shape = 'f32[16,32]{1,0:T(8,128)}', space=vmem, size = 0x2000, scoped, tag = 'scratch operand']
  %s0 = inlined_call_operand.hbm [shape: f32[16,32], index: 0, kind: input, shape index: {}]
  %s1 = inlined_call_operand.hbm [shape: f32[32,32], index: 1, kind: input, shape index: {}]
  %s2 = inlined_call_operand.vmem [shape: f32[1,32], index: 2, kind: input, shape index: {}]
  %s3 = inlined_call_operand.hbm [shape: f32[16,32], index: 3, kind: output, shape index: {}]
  %s4 = sld [smem:[#allocation0]]
  $region38: #{tpu_custom_call.1} parent=0
    _
  %s6 = ssub.s32 1, %s4
  %s7 = scalar_select 0, %s6, %s4
  $region1: #{tpu_custom_call.1} parent=0
    #allocation3 [shape = 'u8[8192]{0}', space=vmem, size = 0x2000, scoped, tag = 'input window, operand 0, single buffered']
    #allocation4 [shape = 's32[1]{0}', space=sflag, size = 0x4, scoped, tag = 'scoped memory for tpu_custom_call.1']
    #allocation5 [shape = 's32[1]{0}', space=sflag, size = 0x4, scoped, tag = 'scoped memory for tpu_custom_call.1']
    #allocation6 [shape = 'u8[16384]{0}', space=vmem, size = 0x4000, scoped, tag = 'input window, operand 1, single buffered']
    #allocation7 [shape = 's32[1]{0}', space=sflag, size = 0x4, scoped, tag = 'scoped memory for tpu_custom_call.1']
    #allocation8 [shape = 'u8[8192]{0}', space=vmem, size = 0x2000, scoped, tag = 'output window, operand 0, single buffered']
    %8 = vsyncpa [#allocation4], 0
    %9 = vsyncpa [#allocation7], 0
    %10 = vsyncpa [#allocation5], 0
    // Predicated region
    $region2: #{tpu_custom_call.1} parent=1 // pred_check
      _
    $region3: #{tpu_custom_call.1} parent=1 // pred_check_branch
      %12 = sbr.rel (0) target = $region5
    $region4: #{tpu_custom_call.1} parent=1 // pred_region
      %14 = vsyncadd [#allocation4], 0
      %s15 = sshll.u32 %s0, 4
      %s16 = int_to_ptr.hbm [resolvable:$true] %s15
      %s17 = sshll.u32 [#allocation3], 4
      %s18 = int_to_ptr.vmem [resolvable:$true] %s17
      %23 = dma.hbm_to_vmem [thread:$0]  %s16, 256, %s18, [#allocation4], 128, 128, 8
    $region5: #{tpu_custom_call.1} parent=1 // pred_fallthru
      _
    // Predicated region
    $region6: #{tpu_custom_call.1} parent=1 // pred_check
      _
    $region7: #{tpu_custom_call.1} parent=1 // pred_check_branch
      %25 = sbr.rel (0) target = $region9
    $region8: #{tpu_custom_call.1} parent=1 // pred_region
      %27 = vsyncadd [#allocation7], 0
      %s28 = sshll.u32 %s1, 4
      %s29 = int_to_ptr.hbm [resolvable:$true] %s28
      %s30 = sshll.u32 [#allocation6], 4
      %s31 = int_to_ptr.vmem [resolvable:$true] %s30
      %36 = dma.hbm_to_vmem [thread:$0]  %s29, 512, %s31, [#allocation7], 128, 128, 8
    $region9: #{tpu_custom_call.1} parent=1 // pred_fallthru
      _
    // Predicated region
    $region10: #{tpu_custom_call.1} parent=1 // pred_check
      _
    $region11: #{tpu_custom_call.1} parent=1 // pred_check_branch
      %38 = sbr.rel (0) target = $region13
    $region12: #{tpu_custom_call.1} parent=1 // pred_region
      _
    $region13: #{tpu_custom_call.1} parent=1 // pred_fallthru
      _
    // Predicated region
    $region14: #{tpu_custom_call.1} parent=1 // pred_check
      _
    $region15: #{tpu_custom_call.1} parent=1 // pred_check_branch
      %40 = sbr.rel (0) target = $region17
    $region16: #{tpu_custom_call.1} parent=1 // pred_region
      %42 = dma.done [#allocation4], 256
    $region17: #{tpu_custom_call.1} parent=1 // pred_fallthru
      _
    // Predicated region
    $region18: #{tpu_custom_call.1} parent=1 // pred_check
      _
    $region19: #{tpu_custom_call.1} parent=1 // pred_check_branch
      %44 = sbr.rel (0) target = $region21
    $region20: #{tpu_custom_call.1} parent=1 // pred_region
      %46 = dma.done [#allocation7], 512
    $region21: #{tpu_custom_call.1} parent=1 // pred_fallthru
      _
    %p47 = scmp.eq.s32.totalorder 0, 0
    // Predicated region
    $region22: #{tpu_custom_call.1} parent=1 // pred_check
      %p48 = pneg %p47
    $region23: #{tpu_custom_call.1} parent=1 // pred_check_branch
      %50 = sbr.rel (%p48) target = $region25
    $region24: #{tpu_custom_call.1} parent=1 // pred_region
      %vm51 = vcmask 261120
      %52 = vst.msk [vmem:[#allocation2] sm:$0xff] %vm51, 0.0
      %53 = vst.msk [vmem:[#allocation2 + $0x8] sm:$0xff] %vm51, 0.0
    $region25: #{tpu_custom_call.1} parent=1 // pred_fallthru
      _
    %v54 = vld [vmem:[#allocation2] sm:$0xff]
    %v55 = vld [vmem:[#allocation2 + $0x8] sm:$0xff]
    %v56 = vld [vmem:[#allocation3] sm:$0xff]
    %v57 = vld [vmem:[#allocation3 + $0x8] sm:$0xff]
    %v58 = vld [vmem:[#allocation6] sm:$0xff]
    %v59 = vld [vmem:[#allocation6 + $0x8] sm:$0xff]
    %v60 = vld [vmem:[#allocation6 + $0x10] sm:$0xff]
    %v61 = vld [vmem:[#allocation6 + $0x18] sm:$0xff]
    %vm62 = vcmask 261120
    %v64 = vsel %vm62, %v56, 0
    %v67 = vsel %vm62, %v57, 0
    %69 = vmatpush.msra.mxu0 0.0
    %70 = vmatpush.msra.mxu0 0.0
    %71 = vmatpush.msra.mxu0 0.0
    %72 = vmatpush.msra.mxu0 0.0
    %73 = vmatpush.msra.mxu0 0.0
    %74 = vmatpush.msra.mxu0 0.0
    %75 = vmatpush.msra.mxu0 0.0
    %76 = vmatpush.msra.mxu0 0.0
    %77 = vmatpush.msra.mxu0 0.0
    %78 = vmatpush.msra.mxu0 0.0
    %79 = vmatpush.msra.mxu0 0.0
    %80 = vmatpush.msra.mxu0 0.0
    %81 = vmatpush.msra.mxu0 %v61
    %82 = vmatpush.msra.mxu0 %v60
    %83 = vmatpush.msra.mxu0 %v59
    %84 = vmatpush.msra.mxu0 %v58
    %85 = vmatmul.f32.gmra.mxu0 %v64
    %v86 = vpop.f32.mrf.mxu0
    %v87 = vadd.f32 0.0, %v86
    %88 = vmatmul.f32.gmra.mxu0 %v67
    %v89 = vpop.f32.mrf.mxu0
    %v90 = vadd.f32 0.0, %v89
    %91 = vdwg.mxu0
    %v92 = vadd.f32 %v54, %v87
    %v93 = vadd.f32 %v55, %v90
    %94 = vst.msk [vmem:[#allocation2] sm:$0xff] %vm62, %v92
    %95 = vst.msk [vmem:[#allocation2 + $0x8] sm:$0xff] %vm62, %v93
    // Predicated region
    $region26: #{tpu_custom_call.1} parent=1 // pred_check
      %p96 = pneg %p47
    $region27: #{tpu_custom_call.1} parent=1 // pred_check_branch
      %98 = sbr.rel (%p96) target = $region29
    $region28: #{tpu_custom_call.1} parent=1 // pred_region
      %v99 = vld [vmem:[#allocation2] sm:$0xff]
      %v100 = vld [vmem:[#allocation2 + $0x8] sm:$0xff]
      %v101 = vld [vmem:[%s2] sm:$0x1]
      %v103 = vperm.slane %v101, 0
      %v105 = vadd.f32 %v99, %v103
      %v106 = vadd.f32 %v100, %v103
      %107 = vst.msk [vmem:[#allocation8] sm:$0xff] %vm62, %v105
      %108 = vst.msk [vmem:[#allocation8 + $0x8] sm:$0xff] %vm62, %v106
    $region29: #{tpu_custom_call.1} parent=1 // pred_fallthru
      _
    // Predicated region
    $region30: #{tpu_custom_call.1} parent=1 // pred_check
      _
    $region31: #{tpu_custom_call.1} parent=1 // pred_check_branch
      %110 = sbr.rel (0) target = $region33
    $region32: #{tpu_custom_call.1} parent=1 // pred_region
      %112 = vsyncadd [#allocation5], 0
      %s113 = sshll.u32 [#allocation8], 4
      %s114 = int_to_ptr.vmem [resolvable:$true] %s113
      %s115 = sshll.u32 %s3, 4
      %s116 = int_to_ptr.hbm [resolvable:$true] %s115
      %121 = dma.vmem_to_hbm [thread:$0]  %s114, 256, %s116, [#allocation5], 128, 128, 8
    $region33: #{tpu_custom_call.1} parent=1 // pred_fallthru
      _
    // Predicated region
    $region34: #{tpu_custom_call.1} parent=1 // pred_check
      _
    $region35: #{tpu_custom_call.1} parent=1 // pred_check_branch
      %123 = sbr.rel (0) target = $region37
    $region36: #{tpu_custom_call.1} parent=1 // pred_region
      %125 = dma.done [#allocation5], 256
    $region37: #{tpu_custom_call.1} parent=1 // pred_fallthru
      _
    %126 = vsyncpa [#allocation4], 1
    %127 = vsyncpa [#allocation7], 1
    %128 = vsyncpa [#allocation5], 1

</llo_original>
